<compile_context>
chip_gen: v6e
topology: v6e:2x2x1
jax: 0.10.0
libtpu: 0.0.40
codegen_flags: <defaults>
</compile_context>

<pallas_src>
import functools

import jax
import jax.numpy as jnp
from jax.experimental import pallas as pl
from jax.experimental.pallas import tpu as pltpu


def _vae_kernel(x_ref, we_ref, be_ref, wd_ref, bd_ref, o_ref, *, compute_dtype):
    # x cast happens on the VMEM tile (no extra HBM traffic; no-op if x is already
    # in compute_dtype).  Weights arrive pre-transposed and pre-cast.
    x = x_ref[...].astype(compute_dtype)                       # (TB, D)

    # encoder: z = x @ We_t   (We_t is (D, L), standard matmul -> no XLU transpose)
    z = jnp.dot(x, we_ref[...], preferred_element_type=jnp.float32)   # (TB, L) f32
    z = z + be_ref[...]                                        # f32 bias add

    # decoder: y = z @ Wd_t   (Wd_t is (L, D))
    y = jnp.dot(z.astype(compute_dtype), wd_ref[...],
                preferred_element_type=jnp.float32)            # (TB, D) f32
    y = y + bd_ref[...]                                        # f32 bias add

    o_ref[...] = y.astype(o_ref.dtype)


def prepare_drug_vae_params(w_enc, b_enc, w_dec, b_dec, *,
                            compute_dtype=jnp.bfloat16):
    """One-time parameter prep (do this once, not per forward call).

    w_enc: (latent_dim, input_dim)  PyTorch nn.Linear layout
    b_enc: (latent_dim,)
    w_dec: (input_dim, latent_dim)  PyTorch nn.Linear layout
    b_dec: (input_dim,)

    Returns a dict with weights transposed into (in_features, out_features)
    matmul layout and cast to `compute_dtype`, and biases as (1, F) f32 rows.
    Note: with compute_dtype=bf16 the intermediate z is also truncated to bf16
    before the decoder matmul (accumulation stays f32).
    """
    L, D = w_enc.shape
    assert w_dec.shape == (D, L) and b_enc.shape == (L,) and b_dec.shape == (D,)
    return dict(
        we_t=jnp.asarray(w_enc).T.astype(compute_dtype),       # (D, L)
        wd_t=jnp.asarray(w_dec).T.astype(compute_dtype),       # (L, D)
        be=jnp.asarray(b_enc, jnp.float32).reshape(1, L),
        bd=jnp.asarray(b_dec, jnp.float32).reshape(1, D),
        compute_dtype=compute_dtype,
    )


def _round_up(n, m):
    return ((n + m - 1) // m) * m


def _pick_batch_tile(B, block_b):
    """Batch tile + grid length.  Guarantees >= 2 grid steps for B >= 128 so
    dimension_semantics=('parallel',) can use both v7x TensorCores."""
    if B < 128:
        return B, 1                                   # genuinely tiny: one step
    if B <= 2 * block_b:
        tb = _round_up(pl.cdiv(B, 2), 8)              # exactly 2 steps
    else:
        tb = block_b                                  # big B: large tiles
    return tb, pl.cdiv(B, tb)


def drug_vae_forward(x, params, *, block_b=2048, out_dtype=None,
                     extra_buffering=False):
    """Fused DrugVAE forward.

    x:      (B, input_dim)
    params: output of prepare_drug_vae_params()
    out_dtype: output dtype (defaults to x.dtype); pass jnp.bfloat16 together
               with bf16 x to halve the dominant HBM streams if the caller allows.
    extra_buffering: request 3-deep pipelining on the x/out streams for long
               grids (useful on v7x where per-step compute is very short).
    """
    B, D = x.shape
    we_t, wd_t, be, bd = params["we_t"], params["wd_t"], params["be"], params["bd"]
    L = we_t.shape[1]
    assert we_t.shape == (D, L) and wd_t.shape == (L, D)
    assert be.shape == (1, L) and bd.shape == (1, D)
    out_dtype = x.dtype if out_dtype is None else out_dtype

    tb, steps = _pick_batch_tile(B, block_b)
    grid = (steps,)

    # x / out BlockSpecs (optionally 3-deep buffered when the grid is long).
    if extra_buffering and steps >= 4:
        x_spec = pl.BlockSpec((tb, D), lambda i: (i, 0), pipeline_mode=pl.Buffered(3))
        o_spec = pl.BlockSpec((tb, D), lambda i: (i, 0), pipeline_mode=pl.Buffered(3))
        io_bufs = 3
    else:
        x_spec = pl.BlockSpec((tb, D), lambda i: (i, 0))
        o_spec = pl.BlockSpec((tb, D), lambda i: (i, 0))
        io_bufs = 2

    # Explicit scoped-VMEM limit sized from the working set (v5e default is only
    # 16 MiB); capped at 64 MiB (v7x per-TC physical VMEM).
    x_bytes = tb * D * jnp.dtype(x.dtype).itemsize
    o_bytes = tb * D * jnp.dtype(out_dtype).itemsize
    w_bytes = 2 * D * L * jnp.dtype(we_t.dtype).itemsize
    b_bytes = (L + D) * 4
    z_bytes = tb * (L + D) * 4                       # f32 intermediates
    vmem_est = io_bufs * (x_bytes + o_bytes) + 2 * (w_bytes + b_bytes) + z_bytes
    vmem_limit = int(min(max(vmem_est + vmem_est // 2, 16 << 20), 64 << 20))

    cost = pl.CostEstimate(
        flops=4 * B * D * L,                         # two matmuls, 2*B*D*L each
        transcendentals=0,
        bytes_accessed=B * D * (jnp.dtype(x.dtype).itemsize
                                + jnp.dtype(out_dtype).itemsize)
                       + w_bytes + b_bytes)

    kernel = functools.partial(_vae_kernel, compute_dtype=params["compute_dtype"])

    return pl.pallas_call(
        kernel,
        out_shape=jax.ShapeDtypeStruct((B, D), out_dtype),
        grid_spec=pltpu.PrefetchScalarGridSpec(
            num_scalar_prefetch=0,
            grid=grid,
            in_specs=[
                x_spec,                                        # x: tiled over batch
                pl.BlockSpec((D, L), lambda i: (0, 0)),        # We_t: resident
                pl.BlockSpec((1, L), lambda i: (0, 0)),        # b_enc: resident
                pl.BlockSpec((L, D), lambda i: (0, 0)),        # Wd_t: resident
                pl.BlockSpec((1, D), lambda i: (0, 0)),        # b_dec: resident
            ],
            out_specs=o_spec,
        ),
        compiler_params=pltpu.CompilerParams(
            dimension_semantics=("parallel",),                 # megacore sharding
            vmem_limit_bytes=vmem_limit),
        cost_estimate=cost,
    )(x, we_t, be, wd_t, bd)


if __name__ == "__main__":
    # Small shapes consistent with the module: input_dim=256, latent_dim=128, batch=8.
    B, INPUT_DIM, LATENT_DIM = 8, 256, 128

    key = jax.random.PRNGKey(0)
    kx, k1, k2, k3, k4, kx2, kx3 = jax.random.split(key, 7)

    x = jax.random.normal(kx, (B, INPUT_DIM), jnp.float32)

    # Deterministic parameter init (PyTorch-Linear-like uniform bounds).
    bound_e = 1.0 / (INPUT_DIM ** 0.5)
    bound_d = 1.0 / (LATENT_DIM ** 0.5)
    w_enc = jax.random.uniform(k1, (LATENT_DIM, INPUT_DIM), jnp.float32, -bound_e, bound_e)
    b_enc = jax.random.uniform(k2, (LATENT_DIM,), jnp.float32, -bound_e, bound_e)
    w_dec = jax.random.uniform(k3, (INPUT_DIM, LATENT_DIM), jnp.float32, -bound_d, bound_d)
    b_dec = jax.random.uniform(k4, (INPUT_DIM,), jnp.float32, -bound_d, bound_d)

    # Reference (plain JAX) forward, same semantics as the PyTorch module.
    def ref_fwd(xx):
        return (xx @ w_enc.T + b_enc) @ w_dec.T + b_dec

    # 1) Exact f32 compute path, tiny batch (single grid step).
    params_f32 = prepare_drug_vae_params(w_enc, b_enc, w_dec, b_dec,
                                         compute_dtype=jnp.float32)
    out = jax.block_until_ready(drug_vae_forward(x, params_f32))
    assert out.shape == (B, INPUT_DIM)
    assert jnp.allclose(out, ref_fwd(x), atol=1e-4, rtol=1e-4), "f32 mismatch vs reference"

    # 2) Default bf16-MXU path (f32 accumulation / bias adds); z is truncated to
    #    bf16 before the decoder matmul, hence the looser tolerance.
    params_bf16 = prepare_drug_vae_params(w_enc, b_enc, w_dec, b_dec)
    out_bf16 = jax.block_until_ready(drug_vae_forward(x, params_bf16))
    assert jnp.allclose(out_bf16, ref_fwd(x), atol=6e-2, rtol=6e-2), "bf16 mismatch vs reference"

    # 3) Moderate batch: tiling guarantees >= 2 grid steps (both v7x TCs busy).
    B2 = 1024
    x2 = jax.random.normal(kx2, (B2, INPUT_DIM), jnp.float32)
    out2 = jax.block_until_ready(drug_vae_forward(x2, params_f32))
    assert out2.shape == (B2, INPUT_DIM)
    assert jnp.allclose(out2, ref_fwd(x2), atol=1e-4, rtol=1e-4), "tiled mismatch vs reference"

    # 4) Ragged batch: partial last tile exercises Pallas masked writeback.
    B3 = 1000
    x3 = jax.random.normal(kx3, (B3, INPUT_DIM), jnp.float32)
    out3 = jax.block_until_ready(drug_vae_forward(x3, params_f32))
    assert out3.shape == (B3, INPUT_DIM)
    assert jnp.allclose(out3, ref_fwd(x3), atol=1e-4, rtol=1e-4), "ragged mismatch vs reference"

    # 5) bf16 I/O option (halves the dominant HBM streams when the caller allows it).
    out_io = jax.block_until_ready(
        drug_vae_forward(x.astype(jnp.bfloat16), params_bf16, out_dtype=jnp.bfloat16))
    assert out_io.dtype == jnp.bfloat16
    assert jnp.allclose(out_io.astype(jnp.float32), ref_fwd(x), atol=1e-1, rtol=1e-1), \
        "bf16-I/O mismatch vs reference"

    print("KERNEL_OK")
</pallas_src>

<mosaic_0001>
module attributes {stable_mosaic.version = 11 : i64} {
  func.func @_vae_kernel(%arg0: i32, %arg1: memref<8x256xf32, #tpu.memory_space<vmem>>, %arg2: memref<256x128xf32, #tpu.memory_space<vmem>>, %arg3: memref<1x128xf32, #tpu.memory_space<vmem>>, %arg4: memref<128x256xf32, #tpu.memory_space<vmem>>, %arg5: memref<1x256xf32, #tpu.memory_space<vmem>>, %arg6: memref<8x256xf32, #tpu.memory_space<vmem>>) attributes {dimension_semantics = [#tpu.dimension_semantics<parallel>], iteration_bounds = array<i64: 1>, scalar_prefetch = 0 : i64, scratch_operands = 0 : i64, tpu.core_type = #tpu.core_type<tc>, window_params = [{transform_indices = @transform_0, window_bounds = array<i64: 8, 256>}, {pipeline_mode = #tpu.pipeline_mode<synchronous>, transform_indices = @transform_1, window_bounds = array<i64: 256, 128>}, {pipeline_mode = #tpu.pipeline_mode<synchronous>, transform_indices = @transform_2, window_bounds = array<i64: 1, 128>}, {pipeline_mode = #tpu.pipeline_mode<synchronous>, transform_indices = @transform_3, window_bounds = array<i64: 128, 256>}, {pipeline_mode = #tpu.pipeline_mode<synchronous>, transform_indices = @transform_4, window_bounds = array<i64: 1, 256>}, {transform_indices = @transform_5, window_bounds = array<i64: 8, 256>}]} {
    %c0 = arith.constant 0 : index
    %c0_0 = arith.constant 0 : index
    %0 = vector.load %arg1[%c0, %c0_0] : memref<8x256xf32, #tpu.memory_space<vmem>>, vector<8x256xf32>
    %c0_1 = arith.constant 0 : index
    %c0_2 = arith.constant 0 : index
    %1 = vector.load %arg2[%c0_1, %c0_2] : memref<256x128xf32, #tpu.memory_space<vmem>>, vector<256x128xf32>
    %cst = arith.constant dense<0.000000e+00> : vector<8x128xf32>
    %2 = tpu.matmul %0, %1, %cst {dimension_numbers = #tpu.dot_dimension_numbers<[1], [0], [0], [1], [0, 0, 1, 1], [], []>} : vector<8x256xf32>, vector<256x128xf32>, vector<8x128xf32> -> vector<8x128xf32>
    %c0_3 = arith.constant 0 : index
    %c0_4 = arith.constant 0 : index
    %3 = vector.load %arg3[%c0_3, %c0_4] : memref<1x128xf32, #tpu.memory_space<vmem>>, vector<1x128xf32>
    %4 = vector.broadcast %3 : vector<1x128xf32> to vector<8x128xf32>
    %5 = arith.addf %2, %4 : vector<8x128xf32>
    %c0_5 = arith.constant 0 : index
    %c0_6 = arith.constant 0 : index
    %6 = vector.load %arg4[%c0_5, %c0_6] : memref<128x256xf32, #tpu.memory_space<vmem>>, vector<128x256xf32>
    %cst_7 = arith.constant dense<0.000000e+00> : vector<8x256xf32>
    %7 = tpu.matmul %5, %6, %cst_7 {dimension_numbers = #tpu.dot_dimension_numbers<[1], [0], [0], [1], [0, 0, 1, 1], [], []>} : vector<8x128xf32>, vector<128x256xf32>, vector<8x256xf32> -> vector<8x256xf32>
    %c0_8 = arith.constant 0 : index
    %c0_9 = arith.constant 0 : index
    %8 = vector.load %arg5[%c0_8, %c0_9] : memref<1x256xf32, #tpu.memory_space<vmem>>, vector<1x256xf32>
    %9 = vector.broadcast %8 : vector<1x256xf32> to vector<8x256xf32>
    %10 = arith.addf %7, %9 : vector<8x256xf32>
    %c0_10 = arith.constant 0 : index
    %c0_11 = arith.constant 0 : index
    %11 = vector.load %arg6[%c0_10, %c0_11] : memref<8x256xf32, #tpu.memory_space<vmem>>, vector<8x256xf32>
    tpu.vector_store %arg6[%c0_10, %c0_11], %10 {strides = array<i32>} : memref<8x256xf32, #tpu.memory_space<vmem>>, vector<8x256xf32>,
    return
  }
  func.func @transform_0(%arg0: i32) -> (i32, i32) {
    %c0_i32 = arith.constant 0 : i32
    %c0_i32_0 = arith.constant 0 : i32
    return %arg0, %c0_i32 : i32, i32
  }
  func.func @transform_1(%arg0: i32) -> (i32, i32) {
    %c0_i32 = arith.constant 0 : i32
    %c0_i32_0 = arith.constant 0 : i32
    %c0_i32_1 = arith.constant 0 : i32
    return %c0_i32, %c0_i32_0 : i32, i32
  }
  func.func @transform_2(%arg0: i32) -> (i32, i32) {
    %c0_i32 = arith.constant 0 : i32
    %c0_i32_0 = arith.constant 0 : i32
    %c0_i32_1 = arith.constant 0 : i32
    return %c0_i32, %c0_i32_0 : i32, i32
  }
  func.func @transform_3(%arg0: i32) -> (i32, i32) {
    %c0_i32 = arith.constant 0 : i32
    %c0_i32_0 = arith.constant 0 : i32
    %c0_i32_1 = arith.constant 0 : i32
    return %c0_i32, %c0_i32_0 : i32, i32
  }
  func.func @transform_4(%arg0: i32) -> (i32, i32) {
    %c0_i32 = arith.constant 0 : i32
    %c0_i32_0 = arith.constant 0 : i32
    %c0_i32_1 = arith.constant 0 : i32
    return %c0_i32, %c0_i32_0 : i32, i32
  }
  func.func @transform_5(%arg0: i32) -> (i32, i32) {
    %c0_i32 = arith.constant 0 : i32
    %c0_i32_0 = arith.constant 0 : i32
    return %arg0, %c0_i32 : i32, i32
  }
}

</mosaic_0001>

<llo_original>
// kernel: tpu_custom_call.1
$region0: #{tpu_custom_call.1}
  #allocation0 [shape = 'u32[]', space=smem, size = 0x4, offset = 0x4, fixed_abs, tag = 'smem constant byte address 0x4 - core index']
  #allocation1 [shape = 'u32[144,128]{1,0:T(1,128)}', space=vmem, size = 0x12000, scoped, tag = 'internal scratch']
  %s0 = inlined_call_operand.hbm [shape: f32[8,256], index: 0, kind: input, shape index: {}]
  %s1 = inlined_call_operand.hbm [shape: f32[256,128], index: 1, kind: input, shape index: {}]
  %s2 = inlined_call_operand.vmem [shape: f32[1,128], index: 2, kind: input, shape index: {}]
  %s3 = inlined_call_operand.hbm [shape: f32[128,256], index: 3, kind: input, shape index: {}]
  %s4 = inlined_call_operand.vmem [shape: f32[1,256], index: 4, kind: input, shape index: {}]
  %s5 = inlined_call_operand.hbm [shape: f32[8,256], index: 5, kind: output, shape index: {}]
  %s6 = sld [smem:[#allocation0]]
  $region42: #{tpu_custom_call.1} parent=0
    _
  %s8 = ssub.s32 1, %s6
  %s9 = scalar_select 0, %s8, %s6
  $region1: #{tpu_custom_call.1} parent=0
    #allocation2 [shape = 'u8[8192]{0}', space=vmem, size = 0x2000, scoped, tag = 'input window, operand 0, single buffered']
    #allocation3 [shape = 's32[1]{0}', space=sflag, size = 0x4, scoped, tag = 'scoped memory for tpu_custom_call.1']
    #allocation4 [shape = 's32[1]{0}', space=sflag, size = 0x4, scoped, tag = 'scoped memory for tpu_custom_call.1']
    #allocation5 [shape = 'u8[131072]{0}', space=vmem, size = 0x20000, scoped, tag = 'input window, operand 1, single buffered']
    #allocation6 [shape = 's32[1]{0}', space=sflag, size = 0x4, scoped, tag = 'scoped memory for tpu_custom_call.1']
    #allocation7 [shape = 'u8[131072]{0}', space=vmem, size = 0x20000, scoped, tag = 'input window, operand 3, single buffered']
    #allocation8 [shape = 'u8[8192]{0}', space=vmem, size = 0x2000, scoped, tag = 'output window, operand 0, single buffered']
    %10 = vsyncpa [#allocation3], 0
    %11 = vsyncpa [#allocation6], 0
    %12 = vsyncpa [#allocation4], 0
    // Predicated region
    $region2: #{tpu_custom_call.1} parent=1 // pred_check
      _
    $region3: #{tpu_custom_call.1} parent=1 // pred_check_branch
      %14 = sbr.rel (0) target = $region5
    $region4: #{tpu_custom_call.1} parent=1 // pred_region
      %s16 = ssub.s32 256, 256
      %17 = vsyncadd [#allocation3], %s16
      %s19 = sshll.u32 [#allocation2], 4
      %s20 = int_to_ptr.vmem [resolvable:$true] %s19
      %22 = dma.hbm_to_vmem [thread:$0]  %s0, 256, %s20, [#allocation3]
    $region5: #{tpu_custom_call.1} parent=1 // pred_fallthru
      _
    // Predicated region
    $region6: #{tpu_custom_call.1} parent=1 // pred_check
      _
    $region7: #{tpu_custom_call.1} parent=1 // pred_check_branch
      %24 = sbr.rel (0) target = $region9
    $region8: #{tpu_custom_call.1} parent=1 // pred_region
      %s26 = ssub.s32 4096, 4096
      %27 = vsyncadd [#allocation6], %s26
      %s28 = sshll.u32 [#allocation5], 4
      %s29 = int_to_ptr.vmem [resolvable:$true] %s28
      %34 = dma.hbm_to_vmem [thread:$0]  %s1, 4096, %s29, [#allocation6], 128, 128, 8
    $region9: #{tpu_custom_call.1} parent=1 // pred_fallthru
      _
    // Predicated region
    $region10: #{tpu_custom_call.1} parent=1 // pred_check
      _
    $region11: #{tpu_custom_call.1} parent=1 // pred_check_branch
      %36 = sbr.rel (0) target = $region13
    $region12: #{tpu_custom_call.1} parent=1 // pred_region
      _
    $region13: #{tpu_custom_call.1} parent=1 // pred_fallthru
      _
    // Predicated region
    $region14: #{tpu_custom_call.1} parent=1 // pred_check
      _
    $region15: #{tpu_custom_call.1} parent=1 // pred_check_branch
      %38 = sbr.rel (0) target = $region17
    $region16: #{tpu_custom_call.1} parent=1 // pred_region
      %s40 = ssub.s32 4096, 4096
      %41 = vsyncadd [#allocation6], %s40
      %s42 = sshll.u32 [#allocation7], 4
      %s43 = int_to_ptr.vmem [resolvable:$true] %s42
      %48 = dma.hbm_to_vmem [thread:$0]  %s3, 4096, %s43, [#allocation6], 256, 256, 16
    $region17: #{tpu_custom_call.1} parent=1 // pred_fallthru
      _
    // Predicated region
    $region18: #{tpu_custom_call.1} parent=1 // pred_check
      _
    $region19: #{tpu_custom_call.1} parent=1 // pred_check_branch
      %50 = sbr.rel (0) target = $region21
    $region20: #{tpu_custom_call.1} parent=1 // pred_region
      _
    $region21: #{tpu_custom_call.1} parent=1 // pred_fallthru
      _
    // Predicated region
    $region22: #{tpu_custom_call.1} parent=1 // pred_check
      _
    $region23: #{tpu_custom_call.1} parent=1 // pred_check_branch
      %52 = sbr.rel (0) target = $region25
    $region24: #{tpu_custom_call.1} parent=1 // pred_region
      %53 = dma.done [#allocation3], 256
    $region25: #{tpu_custom_call.1} parent=1 // pred_fallthru
      _
    // Predicated region
    $region26: #{tpu_custom_call.1} parent=1 // pred_check
      _
    $region27: #{tpu_custom_call.1} parent=1 // pred_check_branch
      %55 = sbr.rel (0) target = $region29
    $region28: #{tpu_custom_call.1} parent=1 // pred_region
      %56 = dma.done [#allocation6], 4096
    $region29: #{tpu_custom_call.1} parent=1 // pred_fallthru
      _
    // Predicated region
    $region30: #{tpu_custom_call.1} parent=1 // pred_check
      _
    $region31: #{tpu_custom_call.1} parent=1 // pred_check_branch
      %58 = sbr.rel (0) target = $region33
    $region32: #{tpu_custom_call.1} parent=1 // pred_region
      %59 = dma.done [#allocation6], 4096
    $region33: #{tpu_custom_call.1} parent=1 // pred_fallthru
      _
    %v60 = vld [vmem:[#allocation2] sm:$0xff]
    %v61 = vld [vmem:[#allocation2 + $0x8] sm:$0xff]
    %v62 = vld [vmem:[#allocation5] sm:$0xff]
    %v63 = vld [vmem:[#allocation5 + $0x8] sm:$0xff]
    %v64 = vld [vmem:[#allocation5 + $0x10] sm:$0xff]
    %v65 = vld [vmem:[#allocation5 + $0x18] sm:$0xff]
    %v66 = vld [vmem:[#allocation5 + $0x20] sm:$0xff]
    %v67 = vld [vmem:[#allocation5 + $0x28] sm:$0xff]
    %v68 = vld [vmem:[#allocation5 + $0x30] sm:$0xff]
    %v69 = vld [vmem:[#allocation5 + $0x38] sm:$0xff]
    %v70 = vld [vmem:[#allocation5 + $0x40] sm:$0xff]
    %v71 = vld [vmem:[#allocation5 + $0x48] sm:$0xff]
    %v72 = vld [vmem:[#allocation5 + $0x50] sm:$0xff]
    %v73 = vld [vmem:[#allocation5 + $0x58] sm:$0xff]
    %v74 = vld [vmem:[#allocation5 + $0x60] sm:$0xff]
    %v75 = vld [vmem:[#allocation5 + $0x68] sm:$0xff]
    %v76 = vld [vmem:[#allocation5 + $0x70] sm:$0xff]
    %v77 = vld [vmem:[#allocation5 + $0x78] sm:$0xff]
    %v78 = vld [vmem:[#allocation5 + $0x80] sm:$0xff]
    %v79 = vld [vmem:[#allocation5 + $0x88] sm:$0xff]
    %v80 = vld [vmem:[#allocation5 + $0x90] sm:$0xff]
    %v81 = vld [vmem:[#allocation5 + $0x98] sm:$0xff]
    %v82 = vld [vmem:[#allocation5 + $0xa0] sm:$0xff]
    %v83 = vld [vmem:[#allocation5 + $0xa8] sm:$0xff]
    %v84 = vld [vmem:[#allocation5 + $0xb0] sm:$0xff]
    %v85 = vld [vmem:[#allocation5 + $0xb8] sm:$0xff]
    %v86 = vld [vmem:[#allocation5 + $0xc0] sm:$0xff]
    %v87 = vld [vmem:[#allocation5 + $0xc8] sm:$0xff]
    %v88 = vld [vmem:[#allocation5 + $0xd0] sm:$0xff]
    %v89 = vld [vmem:[#allocation5 + $0xd8] sm:$0xff]
    %v90 = vld [vmem:[#allocation5 + $0xe0] sm:$0xff]
    %v91 = vld [vmem:[#allocation5 + $0xe8] sm:$0xff]
    %v92 = vld [vmem:[#allocation5 + $0xf0] sm:$0xff]
    %v93 = vld [vmem:[#allocation5 + $0xf8] sm:$0xff]
    %v94 = vld [vmem:[%s2] sm:$0x1]
    %v96 = vlaneseq
    %v97 = vshrl.u32 %v96, 7
    %v98 = vsub.s32 0, %v97
    %v99 = vrot.slane %v94, %v98
    %101 = vmatprep.subr.mxu0 0.0
    %102 = vmatpush1.msra.mxu0 %v77
    %103 = vmatprep.subr.mxu0 0.0
    %104 = vmatpush1.msra.mxu0 %v76
    %105 = vmatprep.subr.mxu0 0.0
    %106 = vmatpush1.msra.mxu0 %v75
    %107 = vmatprep.subr.mxu0 0.0
    %108 = vmatpush1.msra.mxu0 %v74
    %109 = vmatprep.subr.mxu0 0.0
    %110 = vmatpush1.msra.mxu0 %v73
    %111 = vmatprep.subr.mxu0 0.0
    %112 = vmatpush1.msra.mxu0 %v72
    %113 = vmatprep.subr.mxu0 0.0
    %114 = vmatpush1.msra.mxu0 %v71
    %115 = vmatprep.subr.mxu0 0.0
    %116 = vmatpush1.msra.mxu0 %v70
    %117 = vmatprep.subr.mxu0 0.0
    %118 = vmatpush1.msra.mxu0 %v69
    %119 = vmatprep.subr.mxu0 0.0
    %120 = vmatpush1.msra.mxu0 %v68
    %121 = vmatprep.subr.mxu0 0.0
    %122 = vmatpush1.msra.mxu0 %v67
    %123 = vmatprep.subr.mxu0 0.0
    %124 = vmatpush1.msra.mxu0 %v66
    %125 = vmatprep.subr.mxu0 0.0
    %126 = vmatpush1.msra.mxu0 %v65
    %127 = vmatprep.subr.mxu0 0.0
    %128 = vmatpush1.msra.mxu0 %v64
    %129 = vmatprep.subr.mxu0 0.0
    %130 = vmatpush1.msra.mxu0 %v63
    %131 = vmatprep.subr.mxu0 0.0
    %132 = vmatpush1.msra.mxu0 %v62
    %133 = vmatprep.subr.mxu0 0.0
    %134 = vmatpush2.msra.mxu0 %v93
    %135 = vmatprep.subr.mxu0 0.0
    %136 = vmatpush2.msra.mxu0 %v92
    %137 = vmatprep.subr.mxu0 0.0
    %138 = vmatpush2.msra.mxu0 %v91
    %139 = vmatprep.subr.mxu0 0.0
    %140 = vmatpush2.msra.mxu0 %v90
    %141 = vmatprep.subr.mxu0 0.0
    %142 = vmatpush2.msra.mxu0 %v89
    %143 = vmatprep.subr.mxu0 0.0
    %144 = vmatpush2.msra.mxu0 %v88
    %145 = vmatprep.subr.mxu0 0.0
    %146 = vmatpush2.msra.mxu0 %v87
    %147 = vmatprep.subr.mxu0 0.0
    %148 = vmatpush2.msra.mxu0 %v86
    %149 = vmatprep.subr.mxu0 0.0
    %150 = vmatpush2.msra.mxu0 %v85
    %151 = vmatprep.subr.mxu0 0.0
    %152 = vmatpush2.msra.mxu0 %v84
    %153 = vmatprep.subr.mxu0 0.0
    %154 = vmatpush2.msra.mxu0 %v83
    %155 = vmatprep.subr.mxu0 0.0
    %156 = vmatpush2.msra.mxu0 %v82
    %157 = vmatprep.subr.mxu0 0.0
    %158 = vmatpush2.msra.mxu0 %v81
    %159 = vmatprep.subr.mxu0 0.0
    %160 = vmatpush2.msra.mxu0 %v80
    %161 = vmatprep.subr.mxu0 0.0
    %162 = vmatpush2.msra.mxu0 %v79
    %163 = vmatprep.subr.mxu0 0.0
    %164 = vmatpush2.msra.mxu0 %v78
    %165 = vmatprep.mubr.f32.mxu0 %v61
    %166 = vmatmul.mubr.f32.gmra.mxu0 %v60
    %v167 = vpop.f32.mrf.mxu0
    %v168 = vadd.f32 %v99, %v167
    %v169 = vpop.f32.mrf.mxu0
    %170 = vdwg.mxu0
    %v171 = vld [vmem:[#allocation7] sm:$0xff]
    %v172 = vld [vmem:[#allocation7 + $0x8] sm:$0xff]
    %v173 = vld [vmem:[#allocation7 + $0x10] sm:$0xff]
    %v174 = vld [vmem:[#allocation7 + $0x18] sm:$0xff]
    %v175 = vld [vmem:[#allocation7 + $0x20] sm:$0xff]
    %v176 = vld [vmem:[#allocation7 + $0x28] sm:$0xff]
    %v177 = vld [vmem:[#allocation7 + $0x30] sm:$0xff]
    %v178 = vld [vmem:[#allocation7 + $0x38] sm:$0xff]
    %v179 = vld [vmem:[#allocation7 + $0x40] sm:$0xff]
    %v180 = vld [vmem:[#allocation7 + $0x48] sm:$0xff]
    %v181 = vld [vmem:[#allocation7 + $0x50] sm:$0xff]
    %v182 = vld [vmem:[#allocation7 + $0x58] sm:$0xff]
    %v183 = vld [vmem:[#allocation7 + $0x60] sm:$0xff]
    %v184 = vld [vmem:[#allocation7 + $0x68] sm:$0xff]
    %v185 = vld [vmem:[#allocation7 + $0x70] sm:$0xff]
    %v186 = vld [vmem:[#allocation7 + $0x78] sm:$0xff]
    %v187 = vld [vmem:[#allocation7 + $0x80] sm:$0xff]
    %v188 = vld [vmem:[#allocation7 + $0x88] sm:$0xff]
    %v189 = vld [vmem:[#allocation7 + $0x90] sm:$0xff]
    %v190 = vld [vmem:[#allocation7 + $0x98] sm:$0xff]
    %v191 = vld [vmem:[#allocation7 + $0xa0] sm:$0xff]
    %v192 = vld [vmem:[#allocation7 + $0xa8] sm:$0xff]
    %v193 = vld [vmem:[#allocation7 + $0xb0] sm:$0xff]
    %v194 = vld [vmem:[#allocation7 + $0xb8] sm:$0xff]
    %v195 = vld [vmem:[#allocation7 + $0xc0] sm:$0xff]
    %v196 = vld [vmem:[#allocation7 + $0xc8] sm:$0xff]
    %v197 = vld [vmem:[#allocation7 + $0xd0] sm:$0xff]
    %v198 = vld [vmem:[#allocation7 + $0xd8] sm:$0xff]
    %v199 = vld [vmem:[#allocation7 + $0xe0] sm:$0xff]
    %v200 = vld [vmem:[#allocation7 + $0xe8] sm:$0xff]
    %v201 = vld [vmem:[#allocation7 + $0xf0] sm:$0xff]
    %v202 = vld [vmem:[#allocation7 + $0xf8] sm:$0xff]
    %v203 = vld [vmem:[%s4] sm:$0x3]
    %v205 = vlaneseq
    %v206 = vshrl.u32 %v205, 7
    %v207 = vsub.s32 0, %v206
    %v208 = vrot.slane %v203, %v207
    %v209 = vlaneseq
    %v210 = vshrl.u32 %v209, 7
    %v211 = vsub.s32 1, %v210
    %v212 = vrot.slane %v203, %v211
    %215 = vmatprep.subr.mxu0 %v202
    %216 = vmatpush1.msra.mxu0 %v201
    %217 = vmatprep.subr.mxu0 %v200
    %218 = vmatpush1.msra.mxu0 %v199
    %219 = vmatprep.subr.mxu0 %v198
    %220 = vmatpush1.msra.mxu0 %v197
    %221 = vmatprep.subr.mxu0 %v196
    %222 = vmatpush1.msra.mxu0 %v195
    %223 = vmatprep.subr.mxu0 %v194
    %224 = vmatpush1.msra.mxu0 %v193
    %225 = vmatprep.subr.mxu0 %v192
    %226 = vmatpush1.msra.mxu0 %v191
    %227 = vmatprep.subr.mxu0 %v190
    %228 = vmatpush1.msra.mxu0 %v189
    %229 = vmatprep.subr.mxu0 %v188
    %230 = vmatpush1.msra.mxu0 %v187
    %231 = vmatprep.subr.mxu0 %v186
    %232 = vmatpush1.msra.mxu0 %v185
    %233 = vmatprep.subr.mxu0 %v184
    %234 = vmatpush1.msra.mxu0 %v183
    %235 = vmatprep.subr.mxu0 %v182
    %236 = vmatpush1.msra.mxu0 %v181
    %237 = vmatprep.subr.mxu0 %v180
    %238 = vmatpush1.msra.mxu0 %v179
    %239 = vmatprep.subr.mxu0 %v178
    %240 = vmatpush1.msra.mxu0 %v177
    %241 = vmatprep.subr.mxu0 %v176
    %242 = vmatpush1.msra.mxu0 %v175
    %243 = vmatprep.subr.mxu0 %v174
    %244 = vmatpush1.msra.mxu0 %v173
    %245 = vmatprep.subr.mxu0 %v172
    %246 = vmatpush1.msra.mxu0 %v171
    %247 = vmatprep.subr.mxu0 0.0
    %248 = vmatpush2.msra.mxu0 0.0
    %249 = vmatprep.subr.mxu0 0.0
    %250 = vmatpush2.msra.mxu0 0.0
    %251 = vmatprep.subr.mxu0 0.0
    %252 = vmatpush2.msra.mxu0 0.0
    %253 = vmatprep.subr.mxu0 0.0
    %254 = vmatpush2.msra.mxu0 0.0
    %255 = vmatprep.subr.mxu0 0.0
    %256 = vmatpush2.msra.mxu0 0.0
    %257 = vmatprep.subr.mxu0 0.0
    %258 = vmatpush2.msra.mxu0 0.0
    %259 = vmatprep.subr.mxu0 0.0
    %260 = vmatpush2.msra.mxu0 0.0
    %261 = vmatprep.subr.mxu0 0.0
    %262 = vmatpush2.msra.mxu0 0.0
    %263 = vmatprep.subr.mxu0 0.0
    %264 = vmatpush2.msra.mxu0 0.0
    %265 = vmatprep.subr.mxu0 0.0
    %266 = vmatpush2.msra.mxu0 0.0
    %267 = vmatprep.subr.mxu0 0.0
    %268 = vmatpush2.msra.mxu0 0.0
    %269 = vmatprep.subr.mxu0 0.0
    %270 = vmatpush2.msra.mxu0 0.0
    %271 = vmatprep.subr.mxu0 0.0
    %272 = vmatpush2.msra.mxu0 0.0
    %273 = vmatprep.subr.mxu0 0.0
    %274 = vmatpush2.msra.mxu0 0.0
    %275 = vmatprep.subr.mxu0 0.0
    %276 = vmatpush2.msra.mxu0 0.0
    %277 = vmatprep.subr.mxu0 0.0
    %278 = vmatpush2.msra.mxu0 0.0
    %279 = vmatprep.mubr.f32.mxu0 0.0
    %280 = vmatmul.mubr.f32.gmra.mxu0 %v168
    %v281 = vpop.f32.mrf.mxu0
    %v282 = vadd.f32 %v208, %v281
    %v283 = vpop.f32.mrf.mxu0
    %v284 = vadd.f32 %v212, %v283
    %285 = vdwg.mxu0
    %286 = vst [vmem:[#allocation8] sm:$0xff] %v282
    %287 = vst [vmem:[#allocation8 + $0x8] sm:$0xff] %v284
    // Predicated region
    $region34: #{tpu_custom_call.1} parent=1 // pred_check
      _
    $region35: #{tpu_custom_call.1} parent=1 // pred_check_branch
      %289 = sbr.rel (0) target = $region37
    $region36: #{tpu_custom_call.1} parent=1 // pred_region
      %s291 = ssub.s32 256, 256
      %292 = vsyncadd [#allocation4], %s291
      %s294 = sshll.u32 [#allocation8], 4
      %s295 = int_to_ptr.vmem [resolvable:$true] %s294
      %297 = dma.vmem_to_hbm [thread:$0]  %s295, 256, %s5, [#allocation4]
    $region37: #{tpu_custom_call.1} parent=1 // pred_fallthru
      _
    // Predicated region
    $region38: #{tpu_custom_call.1} parent=1 // pred_check
      _
    $region39: #{tpu_custom_call.1} parent=1 // pred_check_branch
      %299 = sbr.rel (0) target = $region41
    $region40: #{tpu_custom_call.1} parent=1 // pred_region
      %300 = dma.done [#allocation4], 256
    $region41: #{tpu_custom_call.1} parent=1 // pred_fallthru
      _
    %301 = vsyncpa [#allocation3], 1
    %302 = vsyncpa [#allocation6], 1
    %303 = vsyncpa [#allocation4], 1

</llo_original>
